<compile_context>
chip_gen: v7x
topology: tpu7x:2x2x1
jax: 0.10.0
libtpu: 0.0.40
codegen_flags: <defaults>
</compile_context>

<pallas_src>
import jax
import jax.numpy as jnp
from jax.experimental import pallas as pl
from jax.experimental.pallas import tpu as pltpu

SUBLANE = 8    # f32 sublane count (second-to-last dim granularity)
LANE = 128     # vreg lane width (last dim granularity)


def _vmem_limit_and_budget():
    """Per-generation scoped-VMEM request + tile-sizing budget (bytes)."""
    try:
        cap = int(pltpu.get_tpu_info().vmem_capacity_bytes)
    except Exception:
        cap = 64 * 1024 * 1024  # conservative fallback (v7x per-core VMEM)
    limit = max(32 * 1024 * 1024, min(cap - 16 * 1024 * 1024, 96 * 1024 * 1024))
    return limit, (limit * 3) // 4  # leave headroom for Mosaic internals


def _choose_tiles(B, K, N, *, x_item, w_item, out_item, budget):
    """Pick (tm, tn, tk) that fit the VMEM budget.

    Budget model:  2*tm*tk*x_item (x, dbl-buffered) + 2*tm*tn*out_item (out)
                 + tm*tn*4 (f32 acc) + n_wbuf*tk*tn*w_item (W) + 2*tn*4 (bias)
    """
    # N tile: full N when modest; else 512 (multiple of 256 fills the 256-wide
    # MXU on v6e/v7x; ragged tails are handled by Pallas).
    tn = N if N <= 2048 else 512
    # K tile: only exact tilings (ragged K would corrupt the reduction).
    tk = K
    if K > 2048:
        for cand in (2048, 1024, 512, 256, 128):
            if K % cand == 0:
                tk = cand
                break
    w_bufs = 1 if (tk == K and tn == N) else 2
    fixed = w_bufs * tk * tn * w_item + 2 * tn * 4
    per_row = 2 * tk * x_item + 2 * tn * out_item + tn * 4
    tm_cap = max((budget - fixed) // max(per_row, 1), SUBLANE)
    tm = int(min(B, 1024, tm_cap))
    if B > 256:
        # Keep >=2 batch tiles so v7x's second TensorCore gets work.
        tm = min(tm, -(-B // 2))
    if tm < B:
        # Tiles that do not span the full batch must stay sublane-aligned.
        tm = max(SUBLANE, (tm // SUBLANE) * SUBLANE)
    return tm, tn, tk


def _make_kernel(compute_dtype, single_k_step):
    if single_k_step:
        def kernel(x_ref, w_ref, b_ref, o_ref):
            acc = jnp.dot(x_ref[...].astype(compute_dtype), w_ref[...],
                          preferred_element_type=jnp.float32)
            o_ref[...] = (acc + b_ref[...]).astype(o_ref.dtype)
        return kernel

    def kernel(x_ref, w_ref, b_ref, o_ref, acc_ref):
        k = pl.program_id(2)

        @pl.when(k == 0)
        def _():
            acc_ref[...] = jnp.zeros_like(acc_ref)

        acc_ref[...] += jnp.dot(x_ref[...].astype(compute_dtype), w_ref[...],
                                preferred_element_type=jnp.float32)

        @pl.when(k == pl.num_programs(2) - 1)
        def _():
            o_ref[...] = (acc_ref[...] + b_ref[...]).astype(o_ref.dtype)

    return kernel


def _block_spec(block_shape, index_map, *, single_buffered=False):
    """BlockSpec; single-buffer grid-invariant (resident) blocks when supported."""
    if single_buffered and hasattr(pl, "Buffered"):
        try:
            return pl.BlockSpec(block_shape, index_map,
                                pipeline_mode=pl.Buffered(1))
        except TypeError:  # older jax without pipeline_mode kwarg
            pass
    return pl.BlockSpec(block_shape, index_map)


def prepare_params(w_t, b, compute_dtype=jnp.bfloat16):
    """One-time parameter prep, hoisted out of the forward path.

    w_t: [input_dim, output_dim] (PyTorch weight, pre-transposed)
    b:   [1, output_dim]
    """
    return w_t.astype(compute_dtype), b.astype(jnp.float32)


def basic_trajectory_model(x, w_t, b):
    """Forward pass of BasicTrajectoryModel (single nn.Linear): x @ W^T + b."""
    B, K = x.shape
    K_w, N = w_t.shape
    assert K == K_w and b.shape == (1, N)

    vmem_limit, budget = _vmem_limit_and_budget()
    tm, tn, tk = _choose_tiles(
        B, K, N,
        x_item=x.dtype.itemsize,
        w_item=w_t.dtype.itemsize,
        out_item=x.dtype.itemsize,
        budget=budget,
    )
    nm, nn_, nk = pl.cdiv(B, tm), pl.cdiv(N, tn), pl.cdiv(K, tk)

    kernel = _make_kernel(w_t.dtype, nk == 1)
    scratch = [] if nk == 1 else [pltpu.VMEM((tm, tn), jnp.float32)]

    cost = pl.CostEstimate(
        flops=2 * B * K * N,
        transcendentals=0,
        bytes_accessed=(x.size * x.dtype.itemsize
                        + w_t.size * w_t.dtype.itemsize
                        + b.size * b.dtype.itemsize
                        + B * N * x.dtype.itemsize),
    )

    return pl.pallas_call(
        kernel,
        out_shape=jax.ShapeDtypeStruct((B, N), x.dtype),
        grid=(nm, nn_, nk),
        in_specs=[
            # x streams: one (tm, tk) tile per (batch, k) step.
            pl.BlockSpec((tm, tk), lambda i, j, k: (i, k)),
            # W^T: resident (single-buffered) when it fits in one block,
            # otherwise streamed over (k, j).
            _block_spec((tk, tn), lambda i, j, k: (k, j),
                        single_buffered=(nn_ == 1 and nk == 1)),
            # bias: resident when N is a single tile.
            _block_spec((1, tn), lambda i, j, k: (0, j),
                        single_buffered=(nn_ == 1)),
        ],
        out_specs=pl.BlockSpec((tm, tn), lambda i, j, k: (i, j)),
        scratch_shapes=scratch,
        compiler_params=pltpu.CompilerParams(
            dimension_semantics=("parallel", "parallel", "arbitrary"),
            vmem_limit_bytes=vmem_limit,
        ),
        cost_estimate=cost,
    )(x, w_t, b)


def init_params(key, input_dim, output_dim, dtype=jnp.float32):
    # Mimics nn.Linear default init (uniform +/- 1/sqrt(fan_in)).  PyTorch
    # stores weight as [output_dim, input_dim]; we keep the transpose
    # [input_dim, output_dim] so the kernel computes x @ W^T directly.
    kw, kb = jax.random.split(key)
    bound = 1.0 / (input_dim ** 0.5)
    w_t = jax.random.uniform(kw, (input_dim, output_dim), dtype, -bound, bound)
    b = jax.random.uniform(kb, (1, output_dim), dtype, -bound, bound)
    return w_t, b


if __name__ == "__main__":
    key = jax.random.PRNGKey(0)
    k_x, k_p = jax.random.split(key)

    batch, input_dim, output_dim = 8, 32, 16

    x = jax.random.normal(k_x, (batch, input_dim), jnp.float32)
    w_t, b = init_params(k_p, input_dim, output_dim)
    ref = x @ w_t + b

    # f32-operand path: structural correctness check at tight tolerance.
    w32, b32 = prepare_params(w_t, b, compute_dtype=jnp.float32)
    out32 = basic_trajectory_model(x, w32, b32)
    jax.block_until_ready(out32)
    assert out32.shape == (batch, output_dim)
    assert jnp.allclose(out32, ref, atol=1e-5, rtol=1e-5)

    # Default bf16-operand path (f32 accumulation): the fast production path.
    wbf, bbf = prepare_params(w_t, b)
    out = basic_trajectory_model(x, wbf, bbf)
    jax.block_until_ready(out)
    assert out.shape == (batch, output_dim)
    assert jnp.allclose(out, ref, atol=2e-2, rtol=2e-2)

    print("KERNEL_OK")
</pallas_src>

<mosaic_0001>
module attributes {stable_mosaic.version = 11 : i64} {
  func.func @kernel(%arg0: i32, %arg1: i32, %arg2: i32, %arg3: memref<8x32xf32, #tpu.memory_space<vmem>>, %arg4: memref<32x16xf32, #tpu.memory_space<vmem>>, %arg5: memref<1x16xf32, #tpu.memory_space<vmem>>, %arg6: memref<8x16xf32, #tpu.memory_space<vmem>>) attributes {dimension_semantics = [#tpu.dimension_semantics<parallel>, #tpu.dimension_semantics<parallel>, #tpu.dimension_semantics<arbitrary>], iteration_bounds = array<i64: 1, 1, 1>, scalar_prefetch = 0 : i64, scratch_operands = 0 : i64, tpu.core_type = #tpu.core_type<tc>, window_params = [{transform_indices = @transform_0, window_bounds = array<i64: 8, 32>}, {pipeline_mode = #tpu.pipeline_mode<synchronous>, transform_indices = @transform_1, window_bounds = array<i64: 32, 16>}, {pipeline_mode = #tpu.pipeline_mode<synchronous>, transform_indices = @transform_2, window_bounds = array<i64: 1, 16>}, {transform_indices = @transform_3, window_bounds = array<i64: 8, 16>}]} {
    %c0 = arith.constant 0 : index
    %c0_0 = arith.constant 0 : index
    %0 = vector.load %arg3[%c0, %c0_0] : memref<8x32xf32, #tpu.memory_space<vmem>>, vector<8x32xf32>
    %c0_1 = arith.constant 0 : index
    %c0_2 = arith.constant 0 : index
    %1 = vector.load %arg4[%c0_1, %c0_2] : memref<32x16xf32, #tpu.memory_space<vmem>>, vector<32x16xf32>
    %cst = arith.constant dense<0.000000e+00> : vector<8x16xf32>
    %2 = tpu.matmul %0, %1, %cst {dimension_numbers = #tpu.dot_dimension_numbers<[1], [0], [0], [1], [0, 0, 1, 1], [], []>} : vector<8x32xf32>, vector<32x16xf32>, vector<8x16xf32> -> vector<8x16xf32>
    %c0_3 = arith.constant 0 : index
    %c0_4 = arith.constant 0 : index
    %3 = vector.load %arg5[%c0_3, %c0_4] : memref<1x16xf32, #tpu.memory_space<vmem>>, vector<1x16xf32>
    %4 = vector.broadcast %3 : vector<1x16xf32> to vector<8x16xf32>
    %5 = arith.addf %2, %4 : vector<8x16xf32>
    %c0_5 = arith.constant 0 : index
    %c0_6 = arith.constant 0 : index
    %6 = vector.load %arg6[%c0_5, %c0_6] : memref<8x16xf32, #tpu.memory_space<vmem>>, vector<8x16xf32>
    tpu.vector_store %arg6[%c0_5, %c0_6], %5 {strides = array<i32>} : memref<8x16xf32, #tpu.memory_space<vmem>>, vector<8x16xf32>,
    return
  }
  func.func @transform_0(%arg0: i32, %arg1: i32, %arg2: i32) -> (i32, i32) {
    %c0_i32 = arith.constant 0 : i32
    return %arg0, %arg2 : i32, i32
  }
  func.func @transform_1(%arg0: i32, %arg1: i32, %arg2: i32) -> (i32, i32) {
    %c0_i32 = arith.constant 0 : i32
    return %arg2, %arg1 : i32, i32
  }
  func.func @transform_2(%arg0: i32, %arg1: i32, %arg2: i32) -> (i32, i32) {
    %c0_i32 = arith.constant 0 : i32
    %c0_i32_0 = arith.constant 0 : i32
    return %c0_i32, %arg1 : i32, i32
  }
  func.func @transform_3(%arg0: i32, %arg1: i32, %arg2: i32) -> (i32, i32) {
    %c0_i32 = arith.constant 0 : i32
    return %arg0, %arg1 : i32, i32
  }
}

</mosaic_0001>

<llo_original>
// kernel: tpu_custom_call.1
$region0: #{tpu_custom_call.1}
  #allocation0 [shape = 'u32[]', space=smem, size = 0x4, offset = 0x4, fixed_abs, tag = 'smem constant byte address 0x4 - core index']
  #allocation1 [shape = 'u32[144,128]{1,0:T(1,128)}', space=vmem, size = 0x12000, scoped, tag = 'internal scratch']
  %s0 = inlined_call_operand.vmem [shape: f32[8,32], index: 0, kind: input, shape index: {}]
  %s1 = inlined_call_operand.vmem [shape: f32[32,16], index: 1, kind: input, shape index: {}]
  %s2 = inlined_call_operand.vmem [shape: f32[1,16], index: 2, kind: input, shape index: {}]
  %s3 = inlined_call_operand.hbm [shape: f32[8,16], index: 3, kind: output, shape index: {}]
  %s4 = sld [smem:[#allocation0]]
  $region22: #{tpu_custom_call.1} parent=0
    _
  %s6 = ssub.s32 1, %s4
  %s7 = scalar_select 0, %s6, %s4
  $region1: #{tpu_custom_call.1} parent=0
    #allocation2 [shape = 'u8[4096]{0}', space=vmem, size = 0x1000, scoped, tag = 'output window, operand 0, single buffered']
    #allocation3 [shape = 's32[1]{0}', space=sflag, size = 0x4, scoped, tag = 'scoped memory for tpu_custom_call.1']
    %8 = vsyncpa [#allocation3], 0
    // Predicated region
    $region2: #{tpu_custom_call.1} parent=1 // pred_check
      _
    $region3: #{tpu_custom_call.1} parent=1 // pred_check_branch
      %10 = sbr.rel (0) target = $region5
    $region4: #{tpu_custom_call.1} parent=1 // pred_region
      _
    $region5: #{tpu_custom_call.1} parent=1 // pred_fallthru
      _
    // Predicated region
    $region6: #{tpu_custom_call.1} parent=1 // pred_check
      _
    $region7: #{tpu_custom_call.1} parent=1 // pred_check_branch
      %12 = sbr.rel (0) target = $region9
    $region8: #{tpu_custom_call.1} parent=1 // pred_region
      _
    $region9: #{tpu_custom_call.1} parent=1 // pred_fallthru
      _
    // Predicated region
    $region10: #{tpu_custom_call.1} parent=1 // pred_check
      _
    $region11: #{tpu_custom_call.1} parent=1 // pred_check_branch
      %14 = sbr.rel (0) target = $region13
    $region12: #{tpu_custom_call.1} parent=1 // pred_region
      _
    $region13: #{tpu_custom_call.1} parent=1 // pred_fallthru
      _
    %v15 = vld [vmem:[%s0] sm:$0xff]
    %v16 = vld [vmem:[%s1] sm:$0xff]
    %v17 = vld [vmem:[%s1 + $0x8] sm:$0xff]
    %v18 = vld [vmem:[%s1 + $0x10] sm:$0xff]
    %v19 = vld [vmem:[%s1 + $0x18] sm:$0xff]
    %v20 = vld [vmem:[%s2] sm:$0x1]
    %v22 = vlaneseq
    %v23 = vshrl.u32 %v22, 7
    %v24 = vsub.s32 0, %v23
    %v25 = vrot.slane %v20, %v24
    %vm27 = vcmask 261120
    %v29 = vsel %vm27, %v15, 0
    %31 = vmatprep.subr.mxu0 0.0
    %32 = vmatpush1.msra.mxu0 %v16
    %33 = vmatprep.subr.mxu0 0.0
    %34 = vmatpush1.msra.mxu0 %v17
    %35 = vmatprep.subr.mxu0 0.0
    %36 = vmatpush1.msra.mxu0 %v18
    %37 = vmatprep.subr.mxu0 0.0
    %38 = vmatpush1.msra.mxu0 %v19
    %39 = vmatprep.subr.mxu0 0.0
    %40 = vmatpush1.msra.mxu0 0.0
    %41 = vmatprep.subr.mxu0 0.0
    %42 = vmatpush1.msra.mxu0 0.0
    %43 = vmatprep.subr.mxu0 0.0
    %44 = vmatpush1.msra.mxu0 0.0
    %45 = vmatprep.subr.mxu0 0.0
    %46 = vmatpush1.msra.mxu0 0.0
    %47 = vmatprep.subr.mxu0 0.0
    %48 = vmatpush1.msra.mxu0 0.0
    %49 = vmatprep.subr.mxu0 0.0
    %50 = vmatpush1.msra.mxu0 0.0
    %51 = vmatprep.subr.mxu0 0.0
    %52 = vmatpush1.msra.mxu0 0.0
    %53 = vmatprep.subr.mxu0 0.0
    %54 = vmatpush1.msra.mxu0 0.0
    %55 = vmatprep.subr.mxu0 0.0
    %56 = vmatpush1.msra.mxu0 0.0
    %57 = vmatprep.subr.mxu0 0.0
    %58 = vmatpush1.msra.mxu0 0.0
    %59 = vmatprep.subr.mxu0 0.0
    %60 = vmatpush1.msra.mxu0 0.0
    %61 = vmatprep.subr.mxu0 0.0
    %62 = vmatpush1.msra.mxu0 0.0
    %63 = vmatprep.subr.mxu0 0.0
    %64 = vmatpush1.msra.mxu0 0.0
    %65 = vmatprep.subr.mxu0 0.0
    %66 = vmatpush1.msra.mxu0 0.0
    %67 = vmatprep.subr.mxu0 0.0
    %68 = vmatpush1.msra.mxu0 0.0
    %69 = vmatprep.subr.mxu0 0.0
    %70 = vmatpush1.msra.mxu0 0.0
    %71 = vmatprep.subr.mxu0 0.0
    %72 = vmatpush1.msra.mxu0 0.0
    %73 = vmatprep.subr.mxu0 0.0
    %74 = vmatpush1.msra.mxu0 0.0
    %75 = vmatprep.subr.mxu0 0.0
    %76 = vmatpush1.msra.mxu0 0.0
    %77 = vmatprep.subr.mxu0 0.0
    %78 = vmatpush1.msra.mxu0 0.0
    %79 = vmatprep.subr.mxu0 0.0
    %80 = vmatpush1.msra.mxu0 0.0
    %81 = vmatprep.subr.mxu0 0.0
    %82 = vmatpush1.msra.mxu0 0.0
    %83 = vmatprep.subr.mxu0 0.0
    %84 = vmatpush1.msra.mxu0 0.0
    %85 = vmatprep.subr.mxu0 0.0
    %86 = vmatpush1.msra.mxu0 0.0
    %87 = vmatprep.subr.mxu0 0.0
    %88 = vmatpush1.msra.mxu0 0.0
    %89 = vmatprep.subr.mxu0 0.0
    %90 = vmatpush1.msra.mxu0 0.0
    %91 = vmatprep.subr.mxu0 0.0
    %92 = vmatpush1.msra.mxu0 0.0
    %93 = vmatprep.subr.mxu0 0.0
    %94 = vmatpush1.msra.mxu0 0.0
    %95 = vmatprep.mubr.f32.mxu0 0.0
    %96 = vmatmul.mubr.f32.gmra.mrb[0].mxu0 %v29
    %v97 = vpop.f32.mrb[0].mxu0
    %v98 = vadd.f32 %v25, %v97
    %v99 = vpop.f32.mrb[0].mxu0
    %100 = vdwg.mxu0
    %vm101 = vcmask 130048
    %102 = vst.msk [vmem:[#allocation2] sm:$0xff] %vm101, %v98
    // Predicated region
    $region14: #{tpu_custom_call.1} parent=1 // pred_check
      _
    $region15: #{tpu_custom_call.1} parent=1 // pred_check_branch
      %104 = sbr.rel (0) target = $region17
    $region16: #{tpu_custom_call.1} parent=1 // pred_region
      %s106 = ssub.s32 128, 128
      %107 = vsyncadd [#allocation3], %s106
      %s109 = sshll.u32 [#allocation2], 4
      %s110 = int_to_ptr.vmem [resolvable:$true] %s109
      %112 = dma.vmem_to_hbm [thread:$0]  %s110, 128, %s3, [#allocation3]
    $region17: #{tpu_custom_call.1} parent=1 // pred_fallthru
      _
    // Predicated region
    $region18: #{tpu_custom_call.1} parent=1 // pred_check
      _
    $region19: #{tpu_custom_call.1} parent=1 // pred_check_branch
      %114 = sbr.rel (0) target = $region21
    $region20: #{tpu_custom_call.1} parent=1 // pred_region
      %115 = dma.done [#allocation3], 128
    $region21: #{tpu_custom_call.1} parent=1 // pred_fallthru
      _
    %116 = vsyncpa [#allocation3], 1

</llo_original>
